<compile_context>
chip_gen: v7x
topology: tpu7x:2x2x1
jax: 0.10.0
libtpu: 0.0.40
codegen_flags: <defaults>
</compile_context>

<pallas_src>
import jax
import jax.numpy as jnp
from jax import lax
from jax.experimental import pallas as pl
from jax.experimental.pallas import tpu as pltpu


def _round_up(a, b):
    return ((a + b - 1) // b) * b


def make_cnn_block_1d(N, C_in, C_out, L, K, eps=1e-5, neg_slope=0.1):
    L_out = L - K + 1
    M = N * L_out                      # real lane columns (batch folded into lanes)
    CK = C_in * K                      # contraction dim of the im2col matmul
    inv_count = 1.0 / float(M)

    # ---- generation-aware VMEM budget ----
    try:
        vmem_cap = int(pltpu.get_tpu_info().vmem_capacity_bytes)
    except Exception:
        vmem_cap = 64 << 20            # conservative fallback (v7x per-core VMEM)
    vmem_limit = max(16 << 20, min(vmem_cap - (16 << 20), 100 << 20))
    budget = vmem_limit - (4 << 20)

    # ---- lane-tile selection: biggest TL whose per-step buffers fit the budget ----
    def _step_bytes(tl):
        conv = (2 * CK * tl * 2        # bf16 im2col tile, double-buffered
                + 2 * C_out * CK * 2   # bf16 weight (constant index, still 2-buffered)
                + 2 * C_out * tl * 4   # f32 y tile out, double-buffered
                + 2 * C_out * 2 * 4)   # per-tile stats out
        bn = (2 * C_out * tl * 4 * 2   # y in + out tiles, double-buffered
              + C_out * 2 * 4)
        return max(conv, bn)

    TL = 128
    for cand in (1024, 512, 256):
        if _step_bytes(cand) <= budget:
            TL = cand
            break
    TL = min(TL, max(128, _round_up(M, 128)))   # don't over-pad tiny problems
    Mp = _round_up(M, TL)                       # lane axis padded to a multiple of TL
    nb = Mp // TL                               # grid steps over lane tiles

    cparams = pltpu.CompilerParams(
        dimension_semantics=("parallel",),      # per-tile blocks: megacore-shardable (v7x)
        vmem_limit_bytes=int(vmem_limit))

    # ---- phase 1: conv tile (one MXU matmul, contraction = C_in*K) + per-tile stats ----
    def conv_stats_kernel(xcol_ref, w_ref, y_ref, st_ref):
        tile = jnp.dot(w_ref[...], xcol_ref[...],
                       preferred_element_type=jnp.float32)        # (C_out, TL) f32
        y_ref[...] = tile                                         # lane-dense store
        # padded lane columns are exact zeros -> unmasked sums are already correct
        s = tile.sum(axis=1, keepdims=True)                       # (C_out, 1)
        q = (tile * tile).sum(axis=1, keepdims=True)              # (C_out, 1)
        st_ref[...] = jnp.concatenate([s, q], axis=1)[None]       # (1, C_out, 2)

    conv_stats = pl.pallas_call(
        conv_stats_kernel,
        out_shape=(jax.ShapeDtypeStruct((C_out, Mp), jnp.float32),
                   jax.ShapeDtypeStruct((nb, C_out, 2), jnp.float32)),
        grid_spec=pltpu.PrefetchScalarGridSpec(
            num_scalar_prefetch=0,
            grid=(nb,),
            in_specs=[
                pl.BlockSpec((CK, TL), lambda b: (0, b)),         # bf16 im2col tile
                pl.BlockSpec((C_out, CK), lambda b: (0, 0)),      # bf16 weight, constant
            ],
            out_specs=[
                pl.BlockSpec((C_out, TL), lambda b: (0, b)),      # y tile
                pl.BlockSpec((1, C_out, 2), lambda b: (b, 0, 0)), # per-tile [sum, sumsq]
            ]),
        compiler_params=cparams,
    )

    # ---- phase 2: y -> gamma*(y-mean)*rsqrt(var+eps)+beta -> LeakyReLU(0.1), in place ----
    def bn_lrelu_kernel(y_ref, ss_ref, o_ref):
        yb = y_ref[...] * ss_ref[:, 0:1] + ss_ref[:, 1:2]         # per-channel FMA
        o_ref[...] = jnp.where(yb >= 0, yb, neg_slope * yb)

    bn_lrelu = pl.pallas_call(
        bn_lrelu_kernel,
        out_shape=jax.ShapeDtypeStruct((C_out, Mp), jnp.float32),
        grid_spec=pltpu.PrefetchScalarGridSpec(
            num_scalar_prefetch=0,
            grid=(nb,),
            in_specs=[
                pl.BlockSpec((C_out, TL), lambda b: (0, b)),      # y tile
                pl.BlockSpec((C_out, 2), lambda b: (0, 0)),       # [scale, shift], constant
            ],
            out_specs=pl.BlockSpec((C_out, TL), lambda b: (0, b))),
        input_output_aliases={0: 0},                              # write back into y's buffer
        compiler_params=cparams,
    )

    @jax.jit
    def forward(x, weight, gamma, beta):
        # im2col slab, lane-dense: rows = (c_in, k), cols = (n, l_out); zero-pad lanes to Mp.
        # bf16 for the streamed operands (MXU-native, halves HBM bytes); f32 accumulation.
        # TODO(synk): build the (CK, TL) panel in-kernel from an un-duplicated halo tile of x
        # (manual DMA / Element-offset index_map) to cut the K-fold im2col HBM duplication.
        # TODO(synk): tile the contraction dim (k grid axis + f32 accumulator scratch, and
        # single-buffer the constant-index weight/ss specs) when C_in*K is too large for a
        # single resident (C_out, CK)/(CK, TL) pair in VMEM.
        x_col = jnp.stack([x[:, :, k:k + L_out] for k in range(K)], axis=2)  # (N, C_in, K, L_out)
        x_col = x_col.transpose(1, 2, 0, 3).reshape(CK, M)
        x_col = jnp.pad(x_col, ((0, 0), (0, Mp - M))).astype(jnp.bfloat16)
        w2 = weight.reshape(C_out, CK).astype(jnp.bfloat16)       # row order matches (c_in, k)

        y, part = conv_stats(x_col, w2)                           # (C_out, Mp), (nb, C_out, 2)

        # tiny cross-tile reduction + BN affine folding (a few C_out-length vectors in XLA)
        tot = part.sum(axis=0)                                    # (C_out, 2)
        mean = tot[:, 0] * inv_count
        var = jnp.maximum(tot[:, 1] * inv_count - mean * mean, 0.0)   # biased (train-mode BN)
        scale = gamma * lax.rsqrt(var + eps)
        shift = beta - mean * scale
        ss = jnp.stack([scale, shift], axis=1)                    # (C_out, 2) f32

        out = bn_lrelu(y, ss)                                     # (C_out, Mp)
        # layout plumbing back to PyTorch NCL
        return out[:, :M].reshape(C_out, N, L_out).transpose(1, 0, 2)

    return forward


def reference(x, weight, gamma, beta, eps=1e-5, neg_slope=0.1):
    # Pure-JAX f32 reference mirroring PyTorch semantics (training-mode BN, biased variance).
    y = lax.conv_general_dilated(
        x, weight, window_strides=(1,), padding="VALID",
        dimension_numbers=("NCH", "OIH", "NCH"))
    mean = y.mean(axis=(0, 2), keepdims=True)
    var = y.var(axis=(0, 2), keepdims=True)
    yn = (y - mean) / jnp.sqrt(var + eps)
    yn = yn * gamma[None, :, None] + beta[None, :, None]
    return jnp.where(yn >= 0, yn, neg_slope * yn)


if __name__ == "__main__":
    # Small shapes consistent with Conv1d(in_channels=4, out_channels=8, kernel_size=3)
    N, C_in, C_out, L, K = 2, 4, 8, 16, 3

    key = jax.random.PRNGKey(0)
    kx, kw, kg, kb = jax.random.split(key, 4)
    x = jax.random.normal(kx, (N, C_in, L), dtype=jnp.float32)
    weight = jax.random.normal(kw, (C_out, C_in, K), dtype=jnp.float32) * 0.1
    gamma = 1.0 + 0.1 * jax.random.normal(kg, (C_out,), dtype=jnp.float32)
    beta = 0.1 * jax.random.normal(kb, (C_out,), dtype=jnp.float32)

    fwd = make_cnn_block_1d(N, C_in, C_out, L, K)
    out = jax.block_until_ready(fwd(x, weight, gamma, beta))

    ref = reference(x, weight, gamma, beta)
    assert out.shape == (N, C_out, L - K + 1)
    # bf16 streamed operands (f32 accumulation) -> relaxed tolerance vs the f32 reference.
    assert jnp.allclose(out, ref, atol=3e-2, rtol=3e-2), "mismatch vs reference"
    print("KERNEL_OK")
</pallas_src>

<mosaic_0001>
module attributes {stable_mosaic.version = 11 : i64} {
  func.func @conv_stats_kernel(%arg0: i32, %arg1: memref<12x128xbf16, #tpu.memory_space<vmem>>, %arg2: memref<8x12xbf16, #tpu.memory_space<vmem>>, %arg3: memref<8x128xf32, #tpu.memory_space<vmem>>, %arg4: memref<1x8x2xf32, #tpu.memory_space<vmem>>) attributes {dimension_semantics = [#tpu.dimension_semantics<parallel>], iteration_bounds = array<i64: 1>, scalar_prefetch = 0 : i64, scratch_operands = 0 : i64, tpu.core_type = #tpu.core_type<tc>, window_params = [{transform_indices = @transform_0, window_bounds = array<i64: 12, 128>}, {pipeline_mode = #tpu.pipeline_mode<synchronous>, transform_indices = @transform_1, window_bounds = array<i64: 8, 12>}, {transform_indices = @transform_2, window_bounds = array<i64: 8, 128>}, {transform_indices = @transform_3, window_bounds = array<i64: 1, 8, 2>}]} {
    %c0 = arith.constant 0 : index
    %c0_0 = arith.constant 0 : index
    %0 = vector.load %arg2[%c0, %c0_0] : memref<8x12xbf16, #tpu.memory_space<vmem>>, vector<8x12xbf16>
    %c0_1 = arith.constant 0 : index
    %c0_2 = arith.constant 0 : index
    %1 = vector.load %arg1[%c0_1, %c0_2] : memref<12x128xbf16, #tpu.memory_space<vmem>>, vector<12x128xbf16>
    %cst = arith.constant dense<0.000000e+00> : vector<8x128xf32>
    %2 = tpu.matmul %0, %1, %cst {dimension_numbers = #tpu.dot_dimension_numbers<[1], [0], [0], [1], [0, 0, 1, 1], [], []>} : vector<8x12xbf16>, vector<12x128xbf16>, vector<8x128xf32> -> vector<8x128xf32>
    %c0_3 = arith.constant 0 : index
    %c0_4 = arith.constant 0 : index
    %3 = vector.load %arg3[%c0_3, %c0_4] : memref<8x128xf32, #tpu.memory_space<vmem>>, vector<8x128xf32>
    tpu.vector_store %arg3[%c0_3, %c0_4], %2 {strides = array<i32>} : memref<8x128xf32, #tpu.memory_space<vmem>>, vector<8x128xf32>,
    %cst_5 = arith.constant dense<0.000000e+00> : vector<8xf32>
    %4 = vector.multi_reduction <add>, %2, %cst_5 [1] : vector<8x128xf32> to vector<8xf32>
    %5 = vector.shape_cast %4 : vector<8xf32> to vector<8x1xf32>
    %6 = arith.mulf %2, %2 : vector<8x128xf32>
    %cst_6 = arith.constant dense<0.000000e+00> : vector<8xf32>
    %7 = vector.multi_reduction <add>, %6, %cst_6 [1] : vector<8x128xf32> to vector<8xf32>
    %8 = vector.shape_cast %7 : vector<8xf32> to vector<8x1xf32>
    %9 = tpu.concatenate %5, %8 in 1 : vector<8x1xf32>, vector<8x1xf32> -> vector<8x2xf32>
    %10 = vector.shape_cast %9 : vector<8x2xf32> to vector<1x8x2xf32>
    %c0_7 = arith.constant 0 : index
    %c0_8 = arith.constant 0 : index
    %c0_9 = arith.constant 0 : index
    %11 = vector.load %arg4[%c0_7, %c0_8, %c0_9] : memref<1x8x2xf32, #tpu.memory_space<vmem>>, vector<1x8x2xf32>
    tpu.vector_store %arg4[%c0_7, %c0_8, %c0_9], %10 {strides = array<i32>} : memref<1x8x2xf32, #tpu.memory_space<vmem>>, vector<1x8x2xf32>,
    return
  }
  func.func @transform_0(%arg0: i32) -> (i32, i32) {
    %c0_i32 = arith.constant 0 : i32
    %c0_i32_0 = arith.constant 0 : i32
    return %c0_i32, %arg0 : i32, i32
  }
  func.func @transform_1(%arg0: i32) -> (i32, i32) {
    %c0_i32 = arith.constant 0 : i32
    %c0_i32_0 = arith.constant 0 : i32
    %c0_i32_1 = arith.constant 0 : i32
    return %c0_i32, %c0_i32_0 : i32, i32
  }
  func.func @transform_2(%arg0: i32) -> (i32, i32) {
    %c0_i32 = arith.constant 0 : i32
    %c0_i32_0 = arith.constant 0 : i32
    return %c0_i32, %arg0 : i32, i32
  }
  func.func @transform_3(%arg0: i32) -> (i32, i32, i32) {
    %c0_i32 = arith.constant 0 : i32
    %c0_i32_0 = arith.constant 0 : i32
    %c0_i32_1 = arith.constant 0 : i32
    return %arg0, %c0_i32, %c0_i32_0 : i32, i32, i32
  }
}

module attributes {stable_mosaic.version = 11 : i64} {
  func.func @bn_lrelu_kernel(%arg0: i32, %arg1: memref<8x128xf32, #tpu.memory_space<vmem>>, %arg2: memref<8x2xf32, #tpu.memory_space<vmem>>, %arg3: memref<8x128xf32, #tpu.memory_space<vmem>>) attributes {dimension_semantics = [#tpu.dimension_semantics<parallel>], iteration_bounds = array<i64: 1>, scalar_prefetch = 0 : i64, scratch_operands = 0 : i64, tpu.core_type = #tpu.core_type<tc>, window_params = [{transform_indices = @transform_0, window_bounds = array<i64: 8, 128>}, {pipeline_mode = #tpu.pipeline_mode<synchronous>, transform_indices = @transform_1, window_bounds = array<i64: 8, 2>}, {transform_indices = @transform_2, window_bounds = array<i64: 8, 128>}]} {
    %c0 = arith.constant 0 : index
    %c0_0 = arith.constant 0 : index
    %0 = vector.load %arg1[%c0, %c0_0] : memref<8x128xf32, #tpu.memory_space<vmem>>, vector<8x128xf32>
    %c0_1 = arith.constant 0 : index
    %c0_2 = arith.constant 0 : index
    %1 = vector.load %arg2[%c0_1, %c0_2] : memref<8x2xf32, #tpu.memory_space<vmem>>, vector<8x1xf32>
    %2 = vector.broadcast %1 : vector<8x1xf32> to vector<8x128xf32>
    %3 = arith.mulf %0, %2 : vector<8x128xf32>
    %c0_3 = arith.constant 0 : index
    %c1 = arith.constant 1 : index
    %4 = vector.load %arg2[%c0_3, %c1] : memref<8x2xf32, #tpu.memory_space<vmem>>, vector<8x1xf32>
    %5 = vector.broadcast %4 : vector<8x1xf32> to vector<8x128xf32>
    %6 = arith.addf %3, %5 : vector<8x128xf32>
    %cst = arith.constant 0.000000e+00 : f32
    %7 = vector.broadcast %cst : f32 to vector<8x128xf32>
    %8 = arith.cmpf oge, %6, %7 : vector<8x128xf32>
    %cst_4 = arith.constant 1.000000e-01 : f32
    %9 = vector.broadcast %cst_4 : f32 to vector<8x128xf32>
    %10 = arith.mulf %9, %6 : vector<8x128xf32>
    %11 = arith.select %8, %6, %10 : vector<8x128xi1>, vector<8x128xf32>
    %c0_5 = arith.constant 0 : index
    %c0_6 = arith.constant 0 : index
    %12 = vector.load %arg3[%c0_5, %c0_6] : memref<8x128xf32, #tpu.memory_space<vmem>>, vector<8x128xf32>
    tpu.vector_store %arg3[%c0_5, %c0_6], %11 {strides = array<i32>} : memref<8x128xf32, #tpu.memory_space<vmem>>, vector<8x128xf32>,
    return
  }
  func.func @transform_0(%arg0: i32) -> (i32, i32) {
    %c0_i32 = arith.constant 0 : i32
    %c0_i32_0 = arith.constant 0 : i32
    return %c0_i32, %arg0 : i32, i32
  }
  func.func @transform_1(%arg0: i32) -> (i32, i32) {
    %c0_i32 = arith.constant 0 : i32
    %c0_i32_0 = arith.constant 0 : i32
    %c0_i32_1 = arith.constant 0 : i32
    return %c0_i32, %c0_i32_0 : i32, i32
  }
  func.func @transform_2(%arg0: i32) -> (i32, i32) {
    %c0_i32 = arith.constant 0 : i32
    %c0_i32_0 = arith.constant 0 : i32
    return %c0_i32, %arg0 : i32, i32
  }
}

</mosaic_0001>

<llo_original>
// kernel: forward.3
$region0: #{forward.3}
  #allocation0 [shape = 'u32[]', space=smem, size = 0x4, offset = 0x4, fixed_abs, tag = 'smem constant byte address 0x4 - core index']
  #allocation1 [shape = 'u32[144,128]{1,0:T(1,128)}', space=vmem, size = 0x12000, scoped, tag = 'internal scratch']
  %s0 = inlined_call_operand.vmem [shape: f32[8,128], index: 0, kind: input, shape index: {}, may-alias: {0,2}]
  %s1 = inlined_call_operand.vmem [shape: f32[8,2], index: 1, kind: input, shape index: {}]
  %s2 = inlined_call_operand.vmem [shape: f32[8,128], index: 2, kind: output, shape index: {}, may-alias: {0,2}]
  %s3 = sld [smem:[#allocation0]]
  $region18: #{forward.3} parent=0
    _
  %s5 = ssub.s32 1, %s3
  %s6 = scalar_select 0, %s5, %s3
  // Predicated region
  $region2: #{forward.3} parent=0 // pred_check
    _
  $region3: #{forward.3} parent=0 // pred_check_branch
    %8 = sbr.rel (0) target = $region5
  $region4: #{forward.3} parent=0 // pred_region
    _
  $region5: #{forward.3} parent=0 // pred_fallthru
    _
  // Predicated region
  $region6: #{forward.3} parent=0 // pred_check
    _
  $region7: #{forward.3} parent=0 // pred_check_branch
    %10 = sbr.rel (0) target = $region9
  $region8: #{forward.3} parent=0 // pred_region
    _
  $region9: #{forward.3} parent=0 // pred_fallthru
    _
  %v11 = vld [vmem:[%s0] sm:$0xff]
  %v12 = vld [vmem:[%s1] sm:$0xff]
  %14 = vset.pattern.permute.xlu0 0
  %15 = vperm.xlu0 %14, %v12
  %v16 = vpop.permute.xlu0 %15
  %v18 = vmul.f32 %v11, %v16
  %19 = vset.pattern.permute.xlu0 1
  %20 = vperm.xlu0 %19, %v12
  %v21 = vpop.permute.xlu0 %20
  %v23 = vadd.f32 %v18, %v21
  %vm24 = vcmp.ge.f32.partialorder %v23, 0.0
  %v25 = vmul.f32 %v23, 0.1
  %v26 = vsel %vm24, %v23, %v25
  %27 = vst [vmem:[%s2] sm:$0xff] %v26
  // Predicated region
  $region10: #{forward.3} parent=0 // pred_check
    _
  $region11: #{forward.3} parent=0 // pred_check_branch
    %29 = sbr.rel (0) target = $region13
  $region12: #{forward.3} parent=0 // pred_region
    _
  $region13: #{forward.3} parent=0 // pred_fallthru
    _
  // Predicated region
  $region14: #{forward.3} parent=0 // pred_check
    _
  $region15: #{forward.3} parent=0 // pred_check_branch
    %31 = sbr.rel (0) target = $region17
  $region16: #{forward.3} parent=0 // pred_region
    _
  $region17: #{forward.3} parent=0 // pred_fallthru
    _

// kernel: forward.2
$region0: #{forward.2}
  #allocation0 [shape = 'u32[]', space=smem, size = 0x4, offset = 0x4, fixed_abs, tag = 'smem constant byte address 0x4 - core index']
  #allocation1 [shape = 'u32[144,128]{1,0:T(1,128)}', space=vmem, size = 0x12000, scoped, tag = 'internal scratch']
  %s0 = inlined_call_operand.vmem [shape: bf16[12,128], index: 0, kind: input, shape index: {}]
  %s1 = inlined_call_operand.vmem [shape: bf16[8,12], index: 1, kind: input, shape index: {}]
  %s2 = inlined_call_operand.vmem [shape: f32[8,128], index: 2, kind: output, shape index: {0}]
  %s3 = inlined_call_operand.vmem [shape: f32[1,8,2], index: 3, kind: output, shape index: {1}]
  %4 = xla_tuple %s2, %s3
  %s5 = sld [smem:[#allocation0]]
  $region26: #{forward.2} parent=0
    _
  %s7 = ssub.s32 1, %s5
  %s8 = scalar_select 0, %s7, %s5
  // Predicated region
  $region2: #{forward.2} parent=0 // pred_check
    _
  $region3: #{forward.2} parent=0 // pred_check_branch
    %10 = sbr.rel (0) target = $region5
  $region4: #{forward.2} parent=0 // pred_region
    _
  $region5: #{forward.2} parent=0 // pred_fallthru
    _
  // Predicated region
  $region6: #{forward.2} parent=0 // pred_check
    _
  $region7: #{forward.2} parent=0 // pred_check_branch
    %12 = sbr.rel (0) target = $region9
  $region8: #{forward.2} parent=0 // pred_region
    _
  $region9: #{forward.2} parent=0 // pred_fallthru
    _
  %v14 = vld [vmem:[%s1] sm:$0xf]
  %v15 = vld [vmem:[%s0] sm:$0xf]
  %v16 = vld [vmem:[%s0 + $0x4] sm:$0x3]
  %v19 = vunpack.c.l.b16 %v15
  %v20 = vunpack.c.l.b16 %v16
  %v21 = vpack.c.b16 %v20, %v19
  %vm22 = vcmask 97280
  %v24 = vsel %vm22, %v14, 0
  %vm26 = vcmask 1045504
  %v28 = vsel %vm26, %v21, 0
  %30 = vmatprep.subr.bf16.mxu0 0
  %31 = vmatpush1.bf16.msra.mxu0 %v28
  %32 = vmatprep.subr.bf16.mxu0 0
  %33 = vmatpush1.bf16.msra.mxu0 0
  %34 = vmatprep.subr.bf16.mxu0 0
  %35 = vmatpush1.bf16.msra.mxu0 0
  %36 = vmatprep.subr.bf16.mxu0 0
  %37 = vmatpush1.bf16.msra.mxu0 0
  %38 = vmatprep.subr.bf16.mxu0 0
  %39 = vmatpush1.bf16.msra.mxu0 0
  %40 = vmatprep.subr.bf16.mxu0 0
  %41 = vmatpush1.bf16.msra.mxu0 0
  %42 = vmatprep.subr.bf16.mxu0 0
  %43 = vmatpush1.bf16.msra.mxu0 0
  %44 = vmatprep.subr.bf16.mxu0 0
  %45 = vmatpush1.bf16.msra.mxu0 0
  %46 = vmatprep.subr.bf16.mxu0 0
  %47 = vmatpush1.bf16.msra.mxu0 0
  %48 = vmatprep.subr.bf16.mxu0 0
  %49 = vmatpush1.bf16.msra.mxu0 0
  %50 = vmatprep.subr.bf16.mxu0 0
  %51 = vmatpush1.bf16.msra.mxu0 0
  %52 = vmatprep.subr.bf16.mxu0 0
  %53 = vmatpush1.bf16.msra.mxu0 0
  %54 = vmatprep.subr.bf16.mxu0 0
  %55 = vmatpush1.bf16.msra.mxu0 0
  %56 = vmatprep.subr.bf16.mxu0 0
  %57 = vmatpush1.bf16.msra.mxu0 0
  %58 = vmatprep.subr.bf16.mxu0 0
  %59 = vmatpush1.bf16.msra.mxu0 0
  %60 = vmatprep.subr.bf16.mxu0 0
  %61 = vmatpush1.bf16.msra.mxu0 0
  %62 = vmatprep.mubr.bf16.mxu0 0
  %63 = vmatmul.mubr.bf16.gmra.mrb[0].mxu0 %v24
  %v64 = vpop.f32.mrb[0].mxu0
  %v65 = vadd.f32 0.0, %v64
  %v66 = vpop.f32.mrb[0].mxu0
  %v67 = vpop.f32.mrb[0].mxu0
  %v68 = vpop.f32.mrb[0].mxu0
  %69 = vdwg.mxu0
  %70 = vst [vmem:[%s2] sm:$0xff] %v65
  %71 = vadd.xlane.f32.xlu0 %v65
  %v72 = vpop.xlane.xlu0 %71
  %v73 = vmul.f32 %v65, %v65
  %74 = vadd.xlane.f32.xlu0 %v73
  %v75 = vpop.xlane.xlu0 %74
  %vm76 = vcmask 7168
  %v77 = vsel %vm76, %v72, %v75
  %vm78 = vcmask 15360
  %79 = vst.msk [vmem:[%s3] sm:$0xff] %vm78, %v77
  // Predicated region
  $region10: #{forward.2} parent=0 // pred_check
    _
  $region11: #{forward.2} parent=0 // pred_check_branch
    %81 = sbr.rel (0) target = $region13
  $region12: #{forward.2} parent=0 // pred_region
    _
  $region13: #{forward.2} parent=0 // pred_fallthru
    _
  // Predicated region
  $region14: #{forward.2} parent=0 // pred_check
    _
  $region15: #{forward.2} parent=0 // pred_check_branch
    %83 = sbr.rel (0) target = $region17
  $region16: #{forward.2} parent=0 // pred_region
    _
  $region17: #{forward.2} parent=0 // pred_fallthru
    _
  // Predicated region
  $region18: #{forward.2} parent=0 // pred_check
    _
  $region19: #{forward.2} parent=0 // pred_check_branch
    %85 = sbr.rel (0) target = $region21
  $region20: #{forward.2} parent=0 // pred_region
    _
  $region21: #{forward.2} parent=0 // pred_fallthru
    _
  // Predicated region
  $region22: #{forward.2} parent=0 // pred_check
    _
  $region23: #{forward.2} parent=0 // pred_check_branch
    %87 = sbr.rel (0) target = $region25
  $region24: #{forward.2} parent=0 // pred_region
    _
  $region25: #{forward.2} parent=0 // pred_fallthru
    _

</llo_original>
